<compile_context>
chip_gen: v7x
topology: tpu7x:2x2x1
jax: 0.10.0
libtpu: 0.0.40
codegen_flags: <defaults>
</compile_context>

<pallas_src>
import functools

import jax
import jax.numpy as jnp
from jax import lax
from jax.experimental import pallas as pl
from jax.experimental.pallas import tpu as pltpu


def _round_up(x, m):
    return (x + m - 1) // m * m


def _split_table_bf16(table):
    """Stack of bf16 components whose ordered f32 sum reconstructs `table` exactly.

    bf16 -> (1, V, H); f32 -> (3, V, H) (manual bf16x3 split: hi/mid/lo residuals each
    fit an 8-bit mantissa, so hi+mid+lo == table bit-exactly for normal values).
    """
    if table.dtype == jnp.bfloat16:
        return table[None]
    assert table.dtype == jnp.float32, "embedding table must be bf16 or f32"
    hi = table.astype(jnp.bfloat16)
    r1 = table - hi.astype(jnp.float32)
    mid = r1.astype(jnp.bfloat16)
    lo = (r1 - mid.astype(jnp.float32)).astype(jnp.bfloat16)
    return jnp.stack([hi, mid, lo])


def _embed_topk_kernel(ids_ref, emb_ref, vals_ref, idx_ref, *, k, vocab, hidden):
    tile = ids_ref.shape[0]
    n_split = emb_ref.shape[0]

    # Deterministic padded lanes/rows (they are sliced off by the wrapper).
    vals_ref[...] = jnp.zeros_like(vals_ref)
    idx_ref[...] = jnp.zeros_like(idx_ref)

    ids = ids_ref[...]                                            # (TILE, 1) int32

    # --- Gather: one_hot @ table on the MXU, one native bf16 pass per component.
    #     one_hot entries are exactly 0/1 in bf16, so each dot returns the selected
    #     row's component exactly in f32; the ordered sum reconstructs the f32 row.
    vocab_iota = lax.broadcasted_iota(jnp.int32, (tile, vocab), 1)
    one_hot = (ids == vocab_iota).astype(jnp.bfloat16)            # (TILE, V)
    x = jnp.dot(one_hot, emb_ref[0], preferred_element_type=jnp.float32)
    for s in range(1, n_split):
        x = x + jnp.dot(one_hot, emb_ref[s], preferred_element_type=jnp.float32)

    # --- Vectorized iterative top-k over the hidden (lane) axis.
    #     First-occurrence tie-breaking (matters for the all-zero padding_idx row)
    #     matches torch.topk / lax.top_k.
    lane_iota = lax.broadcasted_iota(jnp.int32, (tile, hidden), 1)
    r = x
    for j in range(k):
        m = jnp.max(r, axis=-1, keepdims=True)                               # (TILE, 1)
        first = jnp.min(jnp.where(r == m, lane_iota, hidden),
                        axis=-1, keepdims=True)                              # (TILE, 1)
        # Direct narrow column stores into the output block: keeps the per-step results
        # out of vregs entirely (no (TILE, 128) accumulators live across the unroll).
        vals_ref[:, j:j + 1] = m.astype(vals_ref.dtype)
        idx_ref[:, j:j + 1] = first
        r = jnp.where(lane_iota == first, -jnp.inf, r)                       # mask chosen


def embedding_topk(input_ids, emb_table, k, *, max_tile=128):
    """Fused embedding lookup + top-k over the hidden dim (one Pallas kernel)."""
    B, S = input_ids.shape
    V, H = emb_table.shape
    assert 1 <= k <= H, "global_topk must satisfy 1 <= k <= hidden_size"
    BS = B * S

    k_pad = _round_up(k, 128)                         # lane-dense output block width
    # >= 2 grid steps when possible (v7x dual-TC sharding via "parallel"), capped at
    # max_tile to bound vreg pressure in the unrolled top-k loop.
    tile = max(8, min(max_tile, _round_up(pl.cdiv(BS, 2), 8)))
    padded = _round_up(BS, tile)

    flat_ids = input_ids.reshape(-1).astype(jnp.int32)
    if padded != BS:
        flat_ids = jnp.pad(flat_ids, (0, padded - BS))    # padded rows sliced off below
    ids2d = flat_ids.reshape(padded, 1)

    table_split = _split_table_bf16(emb_table)            # (n_split, V, H) bf16
    n_split = table_split.shape[0]

    kernel = functools.partial(_embed_topk_kernel, k=k, vocab=V, hidden=H)

    vals, idxs = pl.pallas_call(
        kernel,
        out_shape=(
            jax.ShapeDtypeStruct((padded, k_pad), emb_table.dtype),
            jax.ShapeDtypeStruct((padded, k_pad), jnp.int32),
        ),
        grid_spec=pltpu.PrefetchScalarGridSpec(
            num_scalar_prefetch=0,
            grid=(padded // tile,),
            in_specs=[
                pl.BlockSpec((tile, 1), lambda i: (i, 0)),        # token-id tile
                # Full table, constant index_map -> single VMEM copy, no double buffer.
                pl.BlockSpec((n_split, V, H), lambda i: (0, 0, 0),
                             pipeline_mode=pl.Buffered(1)),
            ],
            out_specs=(
                pl.BlockSpec((tile, k_pad), lambda i: (i, 0)),
                pl.BlockSpec((tile, k_pad), lambda i: (i, 0)),
            ),
        ),
        compiler_params=pltpu.CompilerParams(
            dimension_semantics=("parallel",),
            vmem_limit_bytes=32 * 1024 * 1024,
        ),
    )(ids2d, table_split)

    values = vals[:BS, :k].reshape(B, S, k)
    indices = idxs[:BS, :k].reshape(B, S, k)
    return values, indices


if __name__ == "__main__":
    # Small config consistent with the module's forward.
    VOCAB = 256
    HIDDEN = 128
    PAD_TOKEN_ID = 0
    GLOBAL_TOPK = 8
    B, S = 2, 8

    key = jax.random.PRNGKey(0)
    k_emb, k_ids = jax.random.split(key)

    # nn.Embedding weight (padding_idx row zeroed).  Primary path: bf16 table, matching
    # the typical neuron_config.torch_dtype and the single-pass MXU gather.
    emb_f32 = jax.random.normal(k_emb, (VOCAB, HIDDEN), dtype=jnp.float32)
    emb_f32 = emb_f32.at[PAD_TOKEN_ID].set(0.0)
    emb_bf16 = emb_f32.astype(jnp.bfloat16)

    input_ids = jax.random.randint(k_ids, (B, S), 0, VOCAB, dtype=jnp.int32)
    # Include a pad token to exercise the all-zero row (tie-breaking path).
    input_ids = input_ids.at[0, 0].set(PAD_TOKEN_ID)

    # --- bf16 table (native single-pass gather) ---
    values, indices = embedding_topk(input_ids, emb_bf16, GLOBAL_TOPK)
    values = jax.block_until_ready(values)
    indices = jax.block_until_ready(indices)

    ref_vals, ref_idx = lax.top_k(emb_bf16[input_ids], GLOBAL_TOPK)
    assert values.shape == (B, S, GLOBAL_TOPK) and indices.dtype == jnp.int32
    assert jnp.allclose(values.astype(jnp.float32), ref_vals.astype(jnp.float32))
    assert jnp.array_equal(indices, ref_idx.astype(jnp.int32))

    # --- f32 table (exact bf16x3 split gather) ---
    values_f, indices_f = embedding_topk(input_ids, emb_f32, GLOBAL_TOPK)
    values_f = jax.block_until_ready(values_f)
    indices_f = jax.block_until_ready(indices_f)

    ref_vals_f, ref_idx_f = lax.top_k(emb_f32[input_ids], GLOBAL_TOPK)
    assert jnp.allclose(values_f, ref_vals_f, atol=0.0, rtol=0.0)
    assert jnp.array_equal(indices_f, ref_idx_f.astype(jnp.int32))

    print("KERNEL_OK")
</pallas_src>

<mosaic_0001>
module attributes {stable_mosaic.version = 11 : i64} {
  func.func @_embed_topk_kernel(%arg0: i32, %arg1: memref<8x1xi32, #tpu.memory_space<vmem>>, %arg2: memref<1x256x128xbf16, #tpu.memory_space<vmem>>, %arg3: memref<8x128xbf16, #tpu.memory_space<vmem>>, %arg4: memref<8x128xi32, #tpu.memory_space<vmem>>) attributes {dimension_semantics = [#tpu.dimension_semantics<parallel>], iteration_bounds = array<i64: 2>, scalar_prefetch = 0 : i64, scratch_operands = 0 : i64, tpu.core_type = #tpu.core_type<tc>, window_params = [{transform_indices = @transform_0, window_bounds = array<i64: 8, 1>}, {pipeline_mode = #tpu.pipeline_mode<synchronous>, transform_indices = @transform_1, window_bounds = array<i64: 1, 256, 128>}, {transform_indices = @transform_2, window_bounds = array<i64: 8, 128>}, {transform_indices = @transform_3, window_bounds = array<i64: 8, 128>}]} {
    %cst = arith.constant 0.000000e+00 : bf16
    %0 = vector.broadcast %cst : bf16 to vector<8x128xbf16>
    %c0 = arith.constant 0 : index
    %c0_0 = arith.constant 0 : index
    %1 = vector.load %arg3[%c0, %c0_0] : memref<8x128xbf16, #tpu.memory_space<vmem>>, vector<8x128xbf16>
    tpu.vector_store %arg3[%c0, %c0_0], %0 {strides = array<i32>} : memref<8x128xbf16, #tpu.memory_space<vmem>>, vector<8x128xbf16>,
    %c0_i32 = arith.constant 0 : i32
    %2 = vector.broadcast %c0_i32 : i32 to vector<8x128xi32>
    %c0_1 = arith.constant 0 : index
    %c0_2 = arith.constant 0 : index
    %3 = vector.load %arg4[%c0_1, %c0_2] : memref<8x128xi32, #tpu.memory_space<vmem>>, vector<8x128xi32>
    tpu.vector_store %arg4[%c0_1, %c0_2], %2 {strides = array<i32>} : memref<8x128xi32, #tpu.memory_space<vmem>>, vector<8x128xi32>,
    %c0_3 = arith.constant 0 : index
    %c0_4 = arith.constant 0 : index
    %4 = vector.load %arg1[%c0_3, %c0_4] : memref<8x1xi32, #tpu.memory_space<vmem>>, vector<8x1xi32>
    %5 = tpu.iota {dimensions = array<i32: 1>} : vector<8x256xi32>
    %6 = vector.broadcast %4 : vector<8x1xi32> to vector<8x256xi32>
    %7 = arith.cmpi eq, %6, %5 : vector<8x256xi32>
    %8 = arith.extui %7 : vector<8x256xi1> to vector<8x256xi32>
    %9 = arith.sitofp %8 : vector<8x256xi32> to vector<8x256xf32>
    %10 = arith.truncf %9 : vector<8x256xf32> to vector<8x256xbf16>
    %c0_5 = arith.constant 0 : index
    %c0_6 = arith.constant 0 : index
    %c0_7 = arith.constant 0 : index
    %11 = vector.load %arg2[%c0_5, %c0_6, %c0_7] : memref<1x256x128xbf16, #tpu.memory_space<vmem>>, vector<1x256x128xbf16>
    %12 = vector.shape_cast %11 : vector<1x256x128xbf16> to vector<256x128xbf16>
    %cst_8 = arith.constant dense<0.000000e+00> : vector<8x128xf32>
    %13 = tpu.matmul %10, %12, %cst_8 {dimension_numbers = #tpu.dot_dimension_numbers<[1], [0], [0], [1], [0, 0, 1, 1], [], []>} : vector<8x256xbf16>, vector<256x128xbf16>, vector<8x128xf32> -> vector<8x128xf32>
    %14 = tpu.iota {dimensions = array<i32: 1>} : vector<8x128xi32>
    %cst_9 = arith.constant dense<0xFF800000> : vector<8xf32>
    %15 = vector.multi_reduction <maximumf>, %13, %cst_9 [1] : vector<8x128xf32> to vector<8xf32>
    %16 = vector.shape_cast %15 : vector<8xf32> to vector<8x1xf32>
    %17 = vector.broadcast %16 : vector<8x1xf32> to vector<8x128xf32>
    %18 = arith.cmpf oeq, %13, %17 : vector<8x128xf32>
    %c128_i32 = arith.constant 128 : i32
    %19 = vector.broadcast %c128_i32 : i32 to vector<8x128xi32>
    %20 = arith.select %18, %14, %19 : vector<8x128xi1>, vector<8x128xi32>
    %cst_10 = arith.constant dense<2147483647> : vector<8xi32>
    %21 = vector.multi_reduction <minsi>, %20, %cst_10 [1] : vector<8x128xi32> to vector<8xi32>
    %22 = vector.shape_cast %21 : vector<8xi32> to vector<8x1xi32>
    %23 = arith.truncf %16 : vector<8x1xf32> to vector<8x1xbf16>
    %c0_11 = arith.constant 0 : index
    %c0_12 = arith.constant 0 : index
    %24 = vector.load %arg3[%c0_11, %c0_12] : memref<8x128xbf16, #tpu.memory_space<vmem>>, vector<8x1xbf16>
    tpu.vector_store %arg3[%c0_11, %c0_12], %23 {strides = array<i32>} : memref<8x128xbf16, #tpu.memory_space<vmem>>, vector<8x1xbf16>,
    %c0_13 = arith.constant 0 : index
    %c0_14 = arith.constant 0 : index
    %25 = vector.load %arg4[%c0_13, %c0_14] : memref<8x128xi32, #tpu.memory_space<vmem>>, vector<8x1xi32>
    tpu.vector_store %arg4[%c0_13, %c0_14], %22 {strides = array<i32>} : memref<8x128xi32, #tpu.memory_space<vmem>>, vector<8x1xi32>,
    %26 = vector.broadcast %22 : vector<8x1xi32> to vector<8x128xi32>
    %27 = arith.cmpi eq, %14, %26 : vector<8x128xi32>
    %cst_15 = arith.constant 0xFF800000 : f32
    %28 = vector.broadcast %cst_15 : f32 to vector<8x128xf32>
    %29 = arith.select %27, %28, %13 : vector<8x128xi1>, vector<8x128xf32>
    %cst_16 = arith.constant dense<0xFF800000> : vector<8xf32>
    %30 = vector.multi_reduction <maximumf>, %29, %cst_16 [1] : vector<8x128xf32> to vector<8xf32>
    %31 = vector.shape_cast %30 : vector<8xf32> to vector<8x1xf32>
    %32 = vector.broadcast %31 : vector<8x1xf32> to vector<8x128xf32>
    %33 = arith.cmpf oeq, %29, %32 : vector<8x128xf32>
    %c128_i32_17 = arith.constant 128 : i32
    %34 = vector.broadcast %c128_i32_17 : i32 to vector<8x128xi32>
    %35 = arith.select %33, %14, %34 : vector<8x128xi1>, vector<8x128xi32>
    %cst_18 = arith.constant dense<2147483647> : vector<8xi32>
    %36 = vector.multi_reduction <minsi>, %35, %cst_18 [1] : vector<8x128xi32> to vector<8xi32>
    %37 = vector.shape_cast %36 : vector<8xi32> to vector<8x1xi32>
    %38 = arith.truncf %31 : vector<8x1xf32> to vector<8x1xbf16>
    %c0_19 = arith.constant 0 : index
    %c1 = arith.constant 1 : index
    %39 = vector.load %arg3[%c0_19, %c1] : memref<8x128xbf16, #tpu.memory_space<vmem>>, vector<8x1xbf16>
    tpu.vector_store %arg3[%c0_19, %c1], %38 {strides = array<i32>} : memref<8x128xbf16, #tpu.memory_space<vmem>>, vector<8x1xbf16>,
    %c0_20 = arith.constant 0 : index
    %c1_21 = arith.constant 1 : index
    %40 = vector.load %arg4[%c0_20, %c1_21] : memref<8x128xi32, #tpu.memory_space<vmem>>, vector<8x1xi32>
    tpu.vector_store %arg4[%c0_20, %c1_21], %37 {strides = array<i32>} : memref<8x128xi32, #tpu.memory_space<vmem>>, vector<8x1xi32>,
    %41 = vector.broadcast %37 : vector<8x1xi32> to vector<8x128xi32>
    %42 = arith.cmpi eq, %14, %41 : vector<8x128xi32>
    %cst_22 = arith.constant 0xFF800000 : f32
    %43 = vector.broadcast %cst_22 : f32 to vector<8x128xf32>
    %44 = arith.select %42, %43, %29 : vector<8x128xi1>, vector<8x128xf32>
    %cst_23 = arith.constant dense<0xFF800000> : vector<8xf32>
    %45 = vector.multi_reduction <maximumf>, %44, %cst_23 [1] : vector<8x128xf32> to vector<8xf32>
    %46 = vector.shape_cast %45 : vector<8xf32> to vector<8x1xf32>
    %47 = vector.broadcast %46 : vector<8x1xf32> to vector<8x128xf32>
    %48 = arith.cmpf oeq, %44, %47 : vector<8x128xf32>
    %c128_i32_24 = arith.constant 128 : i32
    %49 = vector.broadcast %c128_i32_24 : i32 to vector<8x128xi32>
    %50 = arith.select %48, %14, %49 : vector<8x128xi1>, vector<8x128xi32>
    %cst_25 = arith.constant dense<2147483647> : vector<8xi32>
    %51 = vector.multi_reduction <minsi>, %50, %cst_25 [1] : vector<8x128xi32> to vector<8xi32>
    %52 = vector.shape_cast %51 : vector<8xi32> to vector<8x1xi32>
    %53 = arith.truncf %46 : vector<8x1xf32> to vector<8x1xbf16>
    %c0_26 = arith.constant 0 : index
    %c2 = arith.constant 2 : index
    %54 = vector.load %arg3[%c0_26, %c2] : memref<8x128xbf16, #tpu.memory_space<vmem>>, vector<8x1xbf16>
    tpu.vector_store %arg3[%c0_26, %c2], %53 {strides = array<i32>} : memref<8x128xbf16, #tpu.memory_space<vmem>>, vector<8x1xbf16>,
    %c0_27 = arith.constant 0 : index
    %c2_28 = arith.constant 2 : index
    %55 = vector.load %arg4[%c0_27, %c2_28] : memref<8x128xi32, #tpu.memory_space<vmem>>, vector<8x1xi32>
    tpu.vector_store %arg4[%c0_27, %c2_28], %52 {strides = array<i32>} : memref<8x128xi32, #tpu.memory_space<vmem>>, vector<8x1xi32>,
    %56 = vector.broadcast %52 : vector<8x1xi32> to vector<8x128xi32>
    %57 = arith.cmpi eq, %14, %56 : vector<8x128xi32>
    %cst_29 = arith.constant 0xFF800000 : f32
    %58 = vector.broadcast %cst_29 : f32 to vector<8x128xf32>
    %59 = arith.select %57, %58, %44 : vector<8x128xi1>, vector<8x128xf32>
    %cst_30 = arith.constant dense<0xFF800000> : vector<8xf32>
    %60 = vector.multi_reduction <maximumf>, %59, %cst_30 [1] : vector<8x128xf32> to vector<8xf32>
    %61 = vector.shape_cast %60 : vector<8xf32> to vector<8x1xf32>
    %62 = vector.broadcast %61 : vector<8x1xf32> to vector<8x128xf32>
    %63 = arith.cmpf oeq, %59, %62 : vector<8x128xf32>
    %c128_i32_31 = arith.constant 128 : i32
    %64 = vector.broadcast %c128_i32_31 : i32 to vector<8x128xi32>
    %65 = arith.select %63, %14, %64 : vector<8x128xi1>, vector<8x128xi32>
    %cst_32 = arith.constant dense<2147483647> : vector<8xi32>
    %66 = vector.multi_reduction <minsi>, %65, %cst_32 [1] : vector<8x128xi32> to vector<8xi32>
    %67 = vector.shape_cast %66 : vector<8xi32> to vector<8x1xi32>
    %68 = arith.truncf %61 : vector<8x1xf32> to vector<8x1xbf16>
    %c0_33 = arith.constant 0 : index
    %c3 = arith.constant 3 : index
    %69 = vector.load %arg3[%c0_33, %c3] : memref<8x128xbf16, #tpu.memory_space<vmem>>, vector<8x1xbf16>
    tpu.vector_store %arg3[%c0_33, %c3], %68 {strides = array<i32>} : memref<8x128xbf16, #tpu.memory_space<vmem>>, vector<8x1xbf16>,
    %c0_34 = arith.constant 0 : index
    %c3_35 = arith.constant 3 : index
    %70 = vector.load %arg4[%c0_34, %c3_35] : memref<8x128xi32, #tpu.memory_space<vmem>>, vector<8x1xi32>
    tpu.vector_store %arg4[%c0_34, %c3_35], %67 {strides = array<i32>} : memref<8x128xi32, #tpu.memory_space<vmem>>, vector<8x1xi32>,
    %71 = vector.broadcast %67 : vector<8x1xi32> to vector<8x128xi32>
    %72 = arith.cmpi eq, %14, %71 : vector<8x128xi32>
    %cst_36 = arith.constant 0xFF800000 : f32
    %73 = vector.broadcast %cst_36 : f32 to vector<8x128xf32>
    %74 = arith.select %72, %73, %59 : vector<8x128xi1>, vector<8x128xf32>
    %cst_37 = arith.constant dense<0xFF800000> : vector<8xf32>
    %75 = vector.multi_reduction <maximumf>, %74, %cst_37 [1] : vector<8x128xf32> to vector<8xf32>
    %76 = vector.shape_cast %75 : vector<8xf32> to vector<8x1xf32>
    %77 = vector.broadcast %76 : vector<8x1xf32> to vector<8x128xf32>
    %78 = arith.cmpf oeq, %74, %77 : vector<8x128xf32>
    %c128_i32_38 = arith.constant 128 : i32
    %79 = vector.broadcast %c128_i32_38 : i32 to vector<8x128xi32>
    %80 = arith.select %78, %14, %79 : vector<8x128xi1>, vector<8x128xi32>
    %cst_39 = arith.constant dense<2147483647> : vector<8xi32>
    %81 = vector.multi_reduction <minsi>, %80, %cst_39 [1] : vector<8x128xi32> to vector<8xi32>
    %82 = vector.shape_cast %81 : vector<8xi32> to vector<8x1xi32>
    %83 = arith.truncf %76 : vector<8x1xf32> to vector<8x1xbf16>
    %c0_40 = arith.constant 0 : index
    %c4 = arith.constant 4 : index
    %84 = vector.load %arg3[%c0_40, %c4] : memref<8x128xbf16, #tpu.memory_space<vmem>>, vector<8x1xbf16>
    tpu.vector_store %arg3[%c0_40, %c4], %83 {strides = array<i32>} : memref<8x128xbf16, #tpu.memory_space<vmem>>, vector<8x1xbf16>,
    %c0_41 = arith.constant 0 : index
    %c4_42 = arith.constant 4 : index
    %85 = vector.load %arg4[%c0_41, %c4_42] : memref<8x128xi32, #tpu.memory_space<vmem>>, vector<8x1xi32>
    tpu.vector_store %arg4[%c0_41, %c4_42], %82 {strides = array<i32>} : memref<8x128xi32, #tpu.memory_space<vmem>>, vector<8x1xi32>,
    %86 = vector.broadcast %82 : vector<8x1xi32> to vector<8x128xi32>
    %87 = arith.cmpi eq, %14, %86 : vector<8x128xi32>
    %cst_43 = arith.constant 0xFF800000 : f32
    %88 = vector.broadcast %cst_43 : f32 to vector<8x128xf32>
    %89 = arith.select %87, %88, %74 : vector<8x128xi1>, vector<8x128xf32>
    %cst_44 = arith.constant dense<0xFF800000> : vector<8xf32>
    %90 = vector.multi_reduction <maximumf>, %89, %cst_44 [1] : vector<8x128xf32> to vector<8xf32>
    %91 = vector.shape_cast %90 : vector<8xf32> to vector<8x1xf32>
    %92 = vector.broadcast %91 : vector<8x1xf32> to vector<8x128xf32>
    %93 = arith.cmpf oeq, %89, %92 : vector<8x128xf32>
    %c128_i32_45 = arith.constant 128 : i32
    %94 = vector.broadcast %c128_i32_45 : i32 to vector<8x128xi32>
    %95 = arith.select %93, %14, %94 : vector<8x128xi1>, vector<8x128xi32>
    %cst_46 = arith.constant dense<2147483647> : vector<8xi32>
    %96 = vector.multi_reduction <minsi>, %95, %cst_46 [1] : vector<8x128xi32> to vector<8xi32>
    %97 = vector.shape_cast %96 : vector<8xi32> to vector<8x1xi32>
    %98 = arith.truncf %91 : vector<8x1xf32> to vector<8x1xbf16>
    %c0_47 = arith.constant 0 : index
    %c5 = arith.constant 5 : index
    %99 = vector.load %arg3[%c0_47, %c5] : memref<8x128xbf16, #tpu.memory_space<vmem>>, vector<8x1xbf16>
    tpu.vector_store %arg3[%c0_47, %c5], %98 {strides = array<i32>} : memref<8x128xbf16, #tpu.memory_space<vmem>>, vector<8x1xbf16>,
    %c0_48 = arith.constant 0 : index
    %c5_49 = arith.constant 5 : index
    %100 = vector.load %arg4[%c0_48, %c5_49] : memref<8x128xi32, #tpu.memory_space<vmem>>, vector<8x1xi32>
    tpu.vector_store %arg4[%c0_48, %c5_49], %97 {strides = array<i32>} : memref<8x128xi32, #tpu.memory_space<vmem>>, vector<8x1xi32>,
    %101 = vector.broadcast %97 : vector<8x1xi32> to vector<8x128xi32>
    %102 = arith.cmpi eq, %14, %101 : vector<8x128xi32>
    %cst_50 = arith.constant 0xFF800000 : f32
    %103 = vector.broadcast %cst_50 : f32 to vector<8x128xf32>
    %104 = arith.select %102, %103, %89 : vector<8x128xi1>, vector<8x128xf32>
    %cst_51 = arith.constant dense<0xFF800000> : vector<8xf32>
    %105 = vector.multi_reduction <maximumf>, %104, %cst_51 [1] : vector<8x128xf32> to vector<8xf32>
    %106 = vector.shape_cast %105 : vector<8xf32> to vector<8x1xf32>
    %107 = vector.broadcast %106 : vector<8x1xf32> to vector<8x128xf32>
    %108 = arith.cmpf oeq, %104, %107 : vector<8x128xf32>
    %c128_i32_52 = arith.constant 128 : i32
    %109 = vector.broadcast %c128_i32_52 : i32 to vector<8x128xi32>
    %110 = arith.select %108, %14, %109 : vector<8x128xi1>, vector<8x128xi32>
    %cst_53 = arith.constant dense<2147483647> : vector<8xi32>
    %111 = vector.multi_reduction <minsi>, %110, %cst_53 [1] : vector<8x128xi32> to vector<8xi32>
    %112 = vector.shape_cast %111 : vector<8xi32> to vector<8x1xi32>
    %113 = arith.truncf %106 : vector<8x1xf32> to vector<8x1xbf16>
    %c0_54 = arith.constant 0 : index
    %c6 = arith.constant 6 : index
    %114 = vector.load %arg3[%c0_54, %c6] : memref<8x128xbf16, #tpu.memory_space<vmem>>, vector<8x1xbf16>
    tpu.vector_store %arg3[%c0_54, %c6], %113 {strides = array<i32>} : memref<8x128xbf16, #tpu.memory_space<vmem>>, vector<8x1xbf16>,
    %c0_55 = arith.constant 0 : index
    %c6_56 = arith.constant 6 : index
    %115 = vector.load %arg4[%c0_55, %c6_56] : memref<8x128xi32, #tpu.memory_space<vmem>>, vector<8x1xi32>
    tpu.vector_store %arg4[%c0_55, %c6_56], %112 {strides = array<i32>} : memref<8x128xi32, #tpu.memory_space<vmem>>, vector<8x1xi32>,
    %116 = vector.broadcast %112 : vector<8x1xi32> to vector<8x128xi32>
    %117 = arith.cmpi eq, %14, %116 : vector<8x128xi32>
    %cst_57 = arith.constant 0xFF800000 : f32
    %118 = vector.broadcast %cst_57 : f32 to vector<8x128xf32>
    %119 = arith.select %117, %118, %104 : vector<8x128xi1>, vector<8x128xf32>
    %cst_58 = arith.constant dense<0xFF800000> : vector<8xf32>
    %120 = vector.multi_reduction <maximumf>, %119, %cst_58 [1] : vector<8x128xf32> to vector<8xf32>
    %121 = vector.shape_cast %120 : vector<8xf32> to vector<8x1xf32>
    %122 = vector.broadcast %121 : vector<8x1xf32> to vector<8x128xf32>
    %123 = arith.cmpf oeq, %119, %122 : vector<8x128xf32>
    %c128_i32_59 = arith.constant 128 : i32
    %124 = vector.broadcast %c128_i32_59 : i32 to vector<8x128xi32>
    %125 = arith.select %123, %14, %124 : vector<8x128xi1>, vector<8x128xi32>
    %cst_60 = arith.constant dense<2147483647> : vector<8xi32>
    %126 = vector.multi_reduction <minsi>, %125, %cst_60 [1] : vector<8x128xi32> to vector<8xi32>
    %127 = vector.shape_cast %126 : vector<8xi32> to vector<8x1xi32>
    %128 = arith.truncf %121 : vector<8x1xf32> to vector<8x1xbf16>
    %c0_61 = arith.constant 0 : index
    %c7 = arith.constant 7 : index
    %129 = vector.load %arg3[%c0_61, %c7] : memref<8x128xbf16, #tpu.memory_space<vmem>>, vector<8x1xbf16>
    tpu.vector_store %arg3[%c0_61, %c7], %128 {strides = array<i32>} : memref<8x128xbf16, #tpu.memory_space<vmem>>, vector<8x1xbf16>,
    %c0_62 = arith.constant 0 : index
    %c7_63 = arith.constant 7 : index
    %130 = vector.load %arg4[%c0_62, %c7_63] : memref<8x128xi32, #tpu.memory_space<vmem>>, vector<8x1xi32>
    tpu.vector_store %arg4[%c0_62, %c7_63], %127 {strides = array<i32>} : memref<8x128xi32, #tpu.memory_space<vmem>>, vector<8x1xi32>,
    return
  }
  func.func @transform_0(%arg0: i32) -> (i32, i32) {
    %c0_i32 = arith.constant 0 : i32
    %c0_i32_0 = arith.constant 0 : i32
    return %arg0, %c0_i32 : i32, i32
  }
  func.func @transform_1(%arg0: i32) -> (i32, i32, i32) {
    %c0_i32 = arith.constant 0 : i32
    %c0_i32_0 = arith.constant 0 : i32
    %c0_i32_1 = arith.constant 0 : i32
    %c0_i32_2 = arith.constant 0 : i32
    return %c0_i32, %c0_i32_0, %c0_i32_1 : i32, i32, i32
  }
  func.func @transform_2(%arg0: i32) -> (i32, i32) {
    %c0_i32 = arith.constant 0 : i32
    %c0_i32_0 = arith.constant 0 : i32
    return %arg0, %c0_i32 : i32, i32
  }
  func.func @transform_3(%arg0: i32) -> (i32, i32) {
    %c0_i32 = arith.constant 0 : i32
    %c0_i32_0 = arith.constant 0 : i32
    return %arg0, %c0_i32 : i32, i32
  }
}

</mosaic_0001>

<llo_original>
// kernel: tpu_custom_call.1
$region0: #{tpu_custom_call.1}
  #allocation0 [shape = 'u32[]', space=smem, size = 0x4, offset = 0x4, fixed_abs, tag = 'smem constant byte address 0x4 - core index']
  #allocation1 [shape = 'u32[144,128]{1,0:T(1,128)}', space=vmem, size = 0x12000, scoped, tag = 'internal scratch']
  %s0 = inlined_call_operand.vmem [shape: s32[16,1], index: 0, kind: input, shape index: {}]
  %s1 = inlined_call_operand.hbm [shape: bf16[1,256,128], index: 1, kind: input, shape index: {}]
  %s2 = inlined_call_operand.hbm [shape: bf16[16,128], index: 2, kind: output, shape index: {0}]
  %s3 = inlined_call_operand.hbm [shape: s32[16,128], index: 3, kind: output, shape index: {1}]
  %4 = xla_tuple %s2, %s3
  %s5 = sld [smem:[#allocation0]]
  $region53: #{tpu_custom_call.1} parent=0
    _
  %s7 = ssub.s32 1, %s5
  %s8 = scalar_select 0, %s7, %s5
  $region1: #{tpu_custom_call.1} parent=0
    #allocation2 [shape = 'u8[65536]{0}', space=vmem, size = 0x10000, scoped, tag = 'input window, operand 1, single buffered']
    #allocation3 [shape = 's32[2]{0}', space=sflag, size = 0x8, scoped, tag = 'scoped memory for tpu_custom_call.1']
    #allocation4 [shape = 's32[2]{0}', space=sflag, size = 0x8, scoped, tag = 'scoped memory for tpu_custom_call.1']
    #allocation5 [shape = 'u8[4096]{0}', space=vmem, size = 0x1000, scoped, tag = 'output window, operand 0']
    #allocation6 [shape = 'u8[8192]{0}', space=vmem, size = 0x2000, scoped, tag = 'output window, operand 1']
    #allocation7 [shape = 's32[2]{0}', space=sflag, size = 0x8, scoped, tag = 'scoped memory for tpu_custom_call.1']
    %9 = vsyncpa [#allocation3], 0
    %10 = vsyncpa [#allocation4], 0
    %s11 = scalar_lea.sflag [#allocation4], 1
    %12 = vsyncpa %s11, 0
    %13 = vsyncpa [#allocation7], 0
    %s14 = scalar_lea.sflag [#allocation7], 1
    %15 = vsyncpa %s14, 0
    loop: start=0, step=1, limit=4
    $region2: #{tpu_custom_call.1} parent=1 // loop_pre_header
      _
    $region3: #{tpu_custom_call.1} parent=1 // loop_header
      %s17 = sphi 0, %s21
      %p18 = scmp.ge.s32.totalorder %s17, 4
      %s27 = sphi 0, %s29
      %s30 = sphi 0, %s27
      %s31 = sphi 0, %s30
      %s47 = sphi 0, %s31
      %s51 = sphi 0, %s51
      %s53 = sphi 0, %s51
      %s54 = sphi 0, %s53
      %s68 = sphi 0, %s54
      %s74 = sphi 0, %s76
      %s77 = sphi 0, %s74
      %s78 = sphi 0, %s77
      %s94 = sphi 0, %s78
      %s100 = sphi 0, %s102
      %s103 = sphi 0, %s100
      %s104 = sphi 0, %s103
      %s120 = sphi 0, %s104
    $region4: #{tpu_custom_call.1} parent=1 // loop_header_branch
      %20 = sbr.rel (%p18) target = $region8
    $region5: #{tpu_custom_call.1} parent=1 // loop_body
      %s22 = ssub.s32 %s17, 1
      %s23 = ssub.s32 %s17, 2
      %s24 = sadd.s32 %s17, 1
      %s25 = ssub.s32 %s17, %s24
      %p26 = scmp.eq.s32.totalorder %s25, 0
      %s28 = sadd.s32 %s27, 1
      %s29 = scalar_select %p26, %s27, %s28
      %p32 = pneg %p26
      %p33 = scmp.eq.s32.totalorder %s17, 1
      %p34 = por %p32, %p33
      %p35 = scmp.ne.s32.totalorder %s27, %s30
      %p36 = scmp.eq.s32.totalorder %s17, 0
      %p37 = por %p35, %p36
      %p38 = scmp.ne.s32.totalorder %s27, %s30
      %p39 = scmp.eq.s32.totalorder %s22, 1
      %p40 = por %p38, %p39
      %p41 = scmp.ne.s32.totalorder %s30, %s31
      %p42 = scmp.eq.s32.totalorder %s22, 0
      %p43 = por %p41, %p42
      %p44 = scmp.ne.s32.totalorder %s30, %s31
      %p45 = scmp.eq.s32.totalorder %s23, 1
      %p46 = por %p44, %p45
      %p48 = scmp.ne.s32.totalorder %s31, %s47
      %p49 = scmp.eq.s32.totalorder %s23, 0
      %p50 = por %p48, %p49
      %s52 = sadd.s32 %s51, 1
      %p55 = scmp.eq.s32.totalorder %s17, 1
      %p56 = scmp.ne.s32.totalorder %s51, %s53
      %p57 = scmp.eq.s32.totalorder %s17, 0
      %p58 = por %p56, %p57
      %p59 = scmp.ne.s32.totalorder %s51, %s53
      %p60 = scmp.eq.s32.totalorder %s22, 1
      %p61 = por %p59, %p60
      %p62 = scmp.ne.s32.totalorder %s53, %s54
      %p63 = scmp.eq.s32.totalorder %s22, 0
      %p64 = por %p62, %p63
      %p65 = scmp.ne.s32.totalorder %s53, %s54
      %p66 = scmp.eq.s32.totalorder %s23, 1
      %p67 = por %p65, %p66
      %p69 = scmp.ne.s32.totalorder %s54, %s68
      %p70 = scmp.eq.s32.totalorder %s23, 0
      %p71 = por %p69, %p70
      %s72 = ssub.s32 %s17, %s24
      %p73 = scmp.eq.s32.totalorder %s72, 0
      %s75 = sadd.s32 %s74, 1
      %s76 = scalar_select %p73, %s74, %s75
      %p79 = pneg %p73
      %p80 = scmp.eq.s32.totalorder %s17, 1
      %p81 = por %p79, %p80
      %p82 = scmp.ne.s32.totalorder %s74, %s77
      %p83 = scmp.eq.s32.totalorder %s17, 0
      %p84 = por %p82, %p83
      %p85 = scmp.ne.s32.totalorder %s74, %s77
      %p86 = scmp.eq.s32.totalorder %s22, 1
      %p87 = por %p85, %p86
      %p88 = scmp.ne.s32.totalorder %s77, %s78
      %p89 = scmp.eq.s32.totalorder %s22, 0
      %p90 = por %p88, %p89
      %p91 = scmp.ne.s32.totalorder %s77, %s78
      %p92 = scmp.eq.s32.totalorder %s23, 1
      %p93 = por %p91, %p92
      %p95 = scmp.ne.s32.totalorder %s78, %s94
      %p96 = scmp.eq.s32.totalorder %s23, 0
      %p97 = por %p95, %p96
      %s98 = ssub.s32 %s17, %s24
      %p99 = scmp.eq.s32.totalorder %s98, 0
      %s101 = sadd.s32 %s100, 1
      %s102 = scalar_select %p99, %s100, %s101
      %p105 = pneg %p99
      %p106 = scmp.eq.s32.totalorder %s17, 1
      %p107 = por %p105, %p106
      %p108 = scmp.ne.s32.totalorder %s100, %s103
      %p109 = scmp.eq.s32.totalorder %s17, 0
      %p110 = por %p108, %p109
      %p111 = scmp.ne.s32.totalorder %s100, %s103
      %p112 = scmp.eq.s32.totalorder %s22, 1
      %p113 = por %p111, %p112
      %p114 = scmp.ne.s32.totalorder %s103, %s104
      %p115 = scmp.eq.s32.totalorder %s22, 0
      %p116 = por %p114, %p115
      %p117 = scmp.ne.s32.totalorder %s103, %s104
      %p118 = scmp.eq.s32.totalorder %s23, 1
      %p119 = por %p117, %p118
      %p121 = scmp.ne.s32.totalorder %s104, %s120
      %p122 = scmp.eq.s32.totalorder %s23, 0
      %p123 = por %p121, %p122
      %p124 = scmp.le.s32.totalorder 1, %s17
      %p125 = scmp.lt.s32.totalorder %s17, 3
      %p126 = pnand %p124, %p125
      %p127 = pneg %p126
      // Predicated region
      $region9: #{tpu_custom_call.1} parent=5 // pred_check
        _
      $region10: #{tpu_custom_call.1} parent=5 // pred_check_branch
        %129 = sbr.rel (%p126) target = $region12
      $region11: #{tpu_custom_call.1} parent=5 // pred_region
        %s130 = ssub.s32 %s17, 1
        // Predicated region
        $region13: #{tpu_custom_call.1} parent=11 // pred_check
          %p131 = pneg %p64
        $region14: #{tpu_custom_call.1} parent=11 // pred_check_branch
          %133 = sbr.rel (%p131) target = $region16
        $region15: #{tpu_custom_call.1} parent=11 // pred_region
          %s135 = ssub.s32 2048, 2048
          %136 = vsyncadd [#allocation3], %s135
          %s137 = sshll.u32 [#allocation2], 4
          %s138 = int_to_ptr.vmem [resolvable:$true] %s137
          %143 = dma.hbm_to_vmem [thread:$0]  %s1, 2048, %s138, [#allocation3], 64, 64, 4
        $region16: #{tpu_custom_call.1} parent=11 // pred_fallthru
          _
      $region12: #{tpu_custom_call.1} parent=5 // pred_fallthru
        _
      %p144 = scmp.lt.s32.totalorder %s17, 2
      // Predicated region
      $region17: #{tpu_custom_call.1} parent=5 // pred_check
        %p145 = pneg %p144
      $region18: #{tpu_custom_call.1} parent=5 // pred_check_branch
        %147 = sbr.rel (%p145) target = $region20
      $region19: #{tpu_custom_call.1} parent=5 // pred_region
        // Predicated region
        $region21: #{tpu_custom_call.1} parent=19 // pred_check
          %p148 = pneg %p37
        $region22: #{tpu_custom_call.1} parent=19 // pred_check_branch
          %150 = sbr.rel (%p148) target = $region24
        $region23: #{tpu_custom_call.1} parent=19 // pred_region
          %p151 = scmp.lt.s32.totalorder %s17, 1
          %s152 = scalar_select %p151, %s17, 1
          %s153 = smul.addr %s152, 8
          %s154 = scalar_lea.vmem %s0, %s153
        $region24: #{tpu_custom_call.1} parent=19 // pred_fallthru
          _
      $region20: #{tpu_custom_call.1} parent=5 // pred_fallthru
        _
      %p155 = scmp.le.s32.totalorder 1, %s17
      %p156 = scmp.lt.s32.totalorder %s17, 3
      %p157 = pnand %p155, %p156
      %p158 = pneg %p157
      // Predicated region
      $region25: #{tpu_custom_call.1} parent=5 // pred_check
        _
      $region26: #{tpu_custom_call.1} parent=5 // pred_check_branch
        %160 = sbr.rel (%p157) target = $region28
      $region27: #{tpu_custom_call.1} parent=5 // pred_region
        %s161 = ssub.s32 %s17, 1
        // Predicated region
        $region29: #{tpu_custom_call.1} parent=27 // pred_check
          %p162 = pneg %p64
        $region30: #{tpu_custom_call.1} parent=27 // pred_check_branch
          %164 = sbr.rel (%p162) target = $region32
        $region31: #{tpu_custom_call.1} parent=27 // pred_region
          %165 = dma.done [#allocation3], 2048
        $region32: #{tpu_custom_call.1} parent=27 // pred_fallthru
          _
        %p166 = scmp.lt.s32.totalorder %s22, 1
        %s167 = scalar_select %p166, %s22, 1
        %s168 = smul.addr %s167, 8
        %s169 = scalar_lea.vmem %s0, %s168
        %p170 = pneg %p43
        %p171 = pneg %p40
        %p172 = pneg %p64
        %p173 = pneg %p61
        %p174 = pneg %p90
        %p175 = pneg %p87
        %s176 = sand.u32 %s77, 1
        %s177 = scalar_lea.sflag [#allocation4], %s176
        %s178 = sand.u32 %s77, 1
        %s179 = smul.addr %s178, 4
        %s180 = scalar_lea.vmem [#allocation5], %s179
        %p181 = pneg %p116
        %p182 = pneg %p113
        %s183 = sand.u32 %s103, 1
        %s184 = scalar_lea.sflag [#allocation7], %s183
        %s185 = sand.u32 %s103, 1
        %s186 = smul.addr %s185, 8
        %s187 = scalar_lea.vmem [#allocation6], %s186
        %p188 = scmp.lt.s32.totalorder %s22, 1
        %s189 = scalar_select %p188, %s22, 1
        %s190 = smul.addr %s189, 8
        %s191 = scalar_lea.vmem %s0, %s190
        %193 = vst [vmem:[%s180] sm:$0xf] 0
        %194 = vst [vmem:[%s187] sm:$0xff] 0
        %v195 = vld [vmem:[%s191] sm:$0xff]
        %v196 = vlaneseq
        %v197 = vand.u32 %v196, 127
        %v198 = vadd.s32 %v197, 128
        %199 = vset.pattern.permute.xlu0 0
        %200 = vperm.xlu0 %199, %v195
        %v201 = vpop.permute.xlu0 %200
        %vm202 = vcmp.eq.s32.totalorder %v201, %v197
        %vm203 = vcmp.eq.s32.totalorder %v201, %v198
        %v204 = vsel %vm202, 1, 0
        %v205 = vsel %vm203, 1, 0
        %v206 = vcvt.s32.f32 %v204
        %v207 = vcvt.s32.f32 %v205
        %v208 = vpack.c.bf16 %v206, %v206
        %v209 = vpack.c.bf16 %v207, %v207
        %v210 = vld [vmem:[#allocation2] sm:$0xf]
        %v211 = vld [vmem:[#allocation2 + $0x4] sm:$0xf]
        %v212 = vld [vmem:[#allocation2 + $0x8] sm:$0xf]
        %v213 = vld [vmem:[#allocation2 + $0xc] sm:$0xf]
        %v214 = vld [vmem:[#allocation2 + $0x10] sm:$0xf]
        %v215 = vld [vmem:[#allocation2 + $0x14] sm:$0xf]
        %v216 = vld [vmem:[#allocation2 + $0x18] sm:$0xf]
        %v217 = vld [vmem:[#allocation2 + $0x1c] sm:$0xf]
        %v218 = vld [vmem:[#allocation2 + $0x20] sm:$0xf]
        %v219 = vld [vmem:[#allocation2 + $0x24] sm:$0xf]
        %v220 = vld [vmem:[#allocation2 + $0x28] sm:$0xf]
        %v221 = vld [vmem:[#allocation2 + $0x2c] sm:$0xf]
        %v222 = vld [vmem:[#allocation2 + $0x30] sm:$0xf]
        %v223 = vld [vmem:[#allocation2 + $0x34] sm:$0xf]
        %v224 = vld [vmem:[#allocation2 + $0x38] sm:$0xf]
        %v225 = vld [vmem:[#allocation2 + $0x3c] sm:$0xf]
        %v226 = vld [vmem:[#allocation2 + $0x40] sm:$0xf]
        %v227 = vld [vmem:[#allocation2 + $0x44] sm:$0xf]
        %v228 = vld [vmem:[#allocation2 + $0x48] sm:$0xf]
        %v229 = vld [vmem:[#allocation2 + $0x4c] sm:$0xf]
        %v230 = vld [vmem:[#allocation2 + $0x50] sm:$0xf]
        %v231 = vld [vmem:[#allocation2 + $0x54] sm:$0xf]
        %v232 = vld [vmem:[#allocation2 + $0x58] sm:$0xf]
        %v233 = vld [vmem:[#allocation2 + $0x5c] sm:$0xf]
        %v234 = vld [vmem:[#allocation2 + $0x60] sm:$0xf]
        %v235 = vld [vmem:[#allocation2 + $0x64] sm:$0xf]
        %v236 = vld [vmem:[#allocation2 + $0x68] sm:$0xf]
        %v237 = vld [vmem:[#allocation2 + $0x6c] sm:$0xf]
        %v238 = vld [vmem:[#allocation2 + $0x70] sm:$0xf]
        %v239 = vld [vmem:[#allocation2 + $0x74] sm:$0xf]
        %v240 = vld [vmem:[#allocation2 + $0x78] sm:$0xf]
        %v241 = vld [vmem:[#allocation2 + $0x7c] sm:$0xf]
        %v274 = vunpack.c.l.b16 %v210
        %v275 = vunpack.c.l.b16 %v211
        %v276 = vunpack.c.l.b16 %v212
        %v277 = vunpack.c.l.b16 %v213
        %v278 = vunpack.c.l.b16 %v214
        %v279 = vunpack.c.l.b16 %v215
        %v280 = vunpack.c.l.b16 %v216
        %v281 = vunpack.c.l.b16 %v217
        %v282 = vunpack.c.l.b16 %v218
        %v283 = vunpack.c.l.b16 %v219
        %v284 = vunpack.c.l.b16 %v220
        %v285 = vunpack.c.l.b16 %v221
        %v286 = vunpack.c.l.b16 %v222
        %v287 = vunpack.c.l.b16 %v223
        %v288 = vunpack.c.l.b16 %v224
        %v289 = vunpack.c.l.b16 %v225
        %v290 = vunpack.c.l.b16 %v226
        %v291 = vunpack.c.l.b16 %v227
        %v292 = vunpack.c.l.b16 %v228
        %v293 = vunpack.c.l.b16 %v229
        %v294 = vunpack.c.l.b16 %v230
        %v295 = vunpack.c.l.b16 %v231
        %v296 = vunpack.c.l.b16 %v232
        %v297 = vunpack.c.l.b16 %v233
        %v298 = vunpack.c.l.b16 %v234
        %v299 = vunpack.c.l.b16 %v235
        %v300 = vunpack.c.l.b16 %v236
        %v301 = vunpack.c.l.b16 %v237
        %v302 = vunpack.c.l.b16 %v238
        %v303 = vunpack.c.l.b16 %v239
        %v304 = vunpack.c.l.b16 %v240
        %v305 = vunpack.c.l.b16 %v241
        %v306 = vpack.c.b16 %v275, %v274
        %v307 = vpack.c.b16 %v277, %v276
        %v308 = vpack.c.b16 %v279, %v278
        %v309 = vpack.c.b16 %v281, %v280
        %v310 = vpack.c.b16 %v283, %v282
        %v311 = vpack.c.b16 %v285, %v284
        %v312 = vpack.c.b16 %v287, %v286
        %v313 = vpack.c.b16 %v289, %v288
        %v314 = vpack.c.b16 %v291, %v290
        %v315 = vpack.c.b16 %v293, %v292
        %v316 = vpack.c.b16 %v295, %v294
        %v317 = vpack.c.b16 %v297, %v296
        %v318 = vpack.c.b16 %v299, %v298
        %v319 = vpack.c.b16 %v301, %v300
        %v320 = vpack.c.b16 %v303, %v302
        %v321 = vpack.c.b16 %v305, %v304
        %338 = vmatprep.subr.bf16.mxu0 0
        %339 = vmatpush1.bf16.msra.mxu0 %v306
        %340 = vmatprep.subr.bf16.mxu0 0
        %341 = vmatpush1.bf16.msra.mxu0 %v307
        %342 = vmatprep.subr.bf16.mxu0 0
        %343 = vmatpush1.bf16.msra.mxu0 %v308
        %344 = vmatprep.subr.bf16.mxu0 0
        %345 = vmatpush1.bf16.msra.mxu0 %v309
        %346 = vmatprep.subr.bf16.mxu0 0
        %347 = vmatpush1.bf16.msra.mxu0 %v310
        %348 = vmatprep.subr.bf16.mxu0 0
        %349 = vmatpush1.bf16.msra.mxu0 %v311
        %350 = vmatprep.subr.bf16.mxu0 0
        %351 = vmatpush1.bf16.msra.mxu0 %v312
        %352 = vmatprep.subr.bf16.mxu0 0
        %353 = vmatpush1.bf16.msra.mxu0 %v313
        %354 = vmatprep.subr.bf16.mxu0 0
        %355 = vmatpush1.bf16.msra.mxu0 %v314
        %356 = vmatprep.subr.bf16.mxu0 0
        %357 = vmatpush1.bf16.msra.mxu0 %v315
        %358 = vmatprep.subr.bf16.mxu0 0
        %359 = vmatpush1.bf16.msra.mxu0 %v316
        %360 = vmatprep.subr.bf16.mxu0 0
        %361 = vmatpush1.bf16.msra.mxu0 %v317
        %362 = vmatprep.subr.bf16.mxu0 0
        %363 = vmatpush1.bf16.msra.mxu0 %v318
        %364 = vmatprep.subr.bf16.mxu0 0
        %365 = vmatpush1.bf16.msra.mxu0 %v319
        %366 = vmatprep.subr.bf16.mxu0 0
        %367 = vmatpush1.bf16.msra.mxu0 %v320
        %368 = vmatprep.subr.bf16.mxu0 0
        %369 = vmatpush1.bf16.msra.mxu0 %v321
        %370 = vmatprep.mubr.bf16.mxu0 %v209
        %371 = vmatmul.mubr.bf16.gmra.mrb[0].mxu0 %v208
        %v372 = vpop.f32.mrb[0].mxu0
        %v373 = vadd.f32 0.0, %v372
        %v374 = vpop.f32.mrb[0].mxu0
        %v375 = vpop.f32.mrb[0].mxu0
        %v376 = vpop.f32.mrb[0].mxu0
        %377 = vdwg.mxu0
        %378 = vmax.xlane.f32.xlu0 %v373
        %v379 = vpop.xlane.xlu0 %378
        %vm380 = vcmp.eq.f32.partialorder %v373, %v379
        %v381 = vsel %vm380, %v197, 128
        %v382 = vand.u32 %v381, 65535
        %v383 = vshra.s32 %v381, 16
        %v384 = vcvt.s32.f32 %v382
        %v385 = vcvt.s32.f32 %v383
        %386 = vmin.xlane.f32.xlu0 %v385
        %v387 = vpop.xlane.xlu0 %386
        %vm388 = vcmp.eq.f32.partialorder %v385, %v387
        %v389 = vsel %vm388, %v384, inf
        %390 = vmin.xlane.f32.xlu0 %v389
        %v391 = vpop.xlane.xlu0 %390
        %v392 = vcvt.f32.s32 %v391
        %v393 = vcvt.f32.s32 %v387
        %v394 = vshll.u32 %v393, 16
        %v395 = vadd.s32 %v394, %v392
        %v396 = vpack.c.bf16 %v379, %v379
        %vm397 = vcmask 3072
        %398 = vst.msk [vmem:[%s180] sm:$0xf] %vm397, %v396
        %vm399 = vcmask 7168
        %400 = vst.msk [vmem:[%s187] sm:$0xff] %vm399, %v395
        %vm401 = vcmp.eq.s32.totalorder %v197, %v395
        %v402 = vsel %vm401, -inf, %v373
        %403 = vmax.xlane.f32.xlu0 %v402
        %v404 = vpop.xlane.xlu0 %403
        %vm405 = vcmp.eq.f32.partialorder %v402, %v404
        %v406 = vsel %vm405, %v197, 128
        %v407 = vand.u32 %v406, 65535
        %v408 = vshra.s32 %v406, 16
        %v409 = vcvt.s32.f32 %v407
        %v410 = vcvt.s32.f32 %v408
        %411 = vmin.xlane.f32.xlu0 %v410
        %v412 = vpop.xlane.xlu0 %411
        %vm413 = vcmp.eq.f32.partialorder %v410, %v412
        %v414 = vsel %vm413, %v409, inf
        %415 = vmin.xlane.f32.xlu0 %v414
        %v416 = vpop.xlane.xlu0 %415
        %v417 = vcvt.f32.s32 %v416
        %v418 = vcvt.f32.s32 %v412
        %v419 = vshll.u32 %v418, 16
        %v420 = vadd.s32 %v419, %v417
        %v421 = vpack.c.bf16 %v404, %v404
        %vm422 = vcmask 11272
        %423 = vst.msk [vmem:[%s180] sm:$0xf] %vm422, %v421
        %vm424 = vcmask 15368
        %425 = vst.msk [vmem:[%s187] sm:$0xff] %vm424, %v420
        %vm426 = vcmp.eq.s32.totalorder %v197, %v420
        %v427 = vsel %vm426, -inf, %v402
        %428 = vmax.xlane.f32.xlu0 %v427
        %v429 = vpop.xlane.xlu0 %428
        %vm430 = vcmp.eq.f32.partialorder %v427, %v429
        %v431 = vsel %vm430, %v197, 128
        %v432 = vand.u32 %v431, 65535
        %v433 = vshra.s32 %v431, 16
        %v434 = vcvt.s32.f32 %v432
        %v435 = vcvt.s32.f32 %v433
        %436 = vmin.xlane.f32.xlu0 %v435
        %v437 = vpop.xlane.xlu0 %436
        %vm438 = vcmp.eq.f32.partialorder %v435, %v437
        %v439 = vsel %vm438, %v434, inf
        %440 = vmin.xlane.f32.xlu0 %v439
        %v441 = vpop.xlane.xlu0 %440
        %v442 = vcvt.f32.s32 %v441
        %v443 = vcvt.f32.s32 %v437
        %v444 = vshll.u32 %v443, 16
        %v445 = vadd.s32 %v444, %v442
        %v446 = vpack.c.bf16 %v429, %v429
        %vm447 = vcmask 19472
        %448 = vst.msk [vmem:[%s180] sm:$0xf] %vm447, %v446
        %vm449 = vcmask 23568
        %450 = vst.msk [vmem:[%s187] sm:$0xff] %vm449, %v445
        %vm451 = vcmp.eq.s32.totalorder %v197, %v445
        %v452 = vsel %vm451, -inf, %v427
        %453 = vmax.xlane.f32.xlu0 %v452
        %v454 = vpop.xlane.xlu0 %453
        %vm455 = vcmp.eq.f32.partialorder %v452, %v454
        %v456 = vsel %vm455, %v197, 128
        %v457 = vand.u32 %v456, 65535
        %v458 = vshra.s32 %v456, 16
        %v459 = vcvt.s32.f32 %v457
        %v460 = vcvt.s32.f32 %v458
        %461 = vmin.xlane.f32.xlu0 %v460
        %v462 = vpop.xlane.xlu0 %461
        %vm463 = vcmp.eq.f32.partialorder %v460, %v462
        %v464 = vsel %vm463, %v459, inf
        %465 = vmin.xlane.f32.xlu0 %v464
        %v466 = vpop.xlane.xlu0 %465
        %v467 = vcvt.f32.s32 %v466
        %v468 = vcvt.f32.s32 %v462
        %v469 = vshll.u32 %v468, 16
        %v470 = vadd.s32 %v469, %v467
        %v471 = vpack.c.bf16 %v454, %v454
        %vm472 = vcmask 27672
        %473 = vst.msk [vmem:[%s180] sm:$0xf] %vm472, %v471
        %vm474 = vcmask 31768
        %475 = vst.msk [vmem:[%s187] sm:$0xff] %vm474, %v470
        %vm476 = vcmp.eq.s32.totalorder %v197, %v470
        %v477 = vsel %vm476, -inf, %v452
        %478 = vmax.xlane.f32.xlu0 %v477
        %v479 = vpop.xlane.xlu0 %478
        %vm480 = vcmp.eq.f32.partialorder %v477, %v479
        %v481 = vsel %vm480, %v197, 128
        %v482 = vand.u32 %v481, 65535
        %v483 = vshra.s32 %v481, 16
        %v484 = vcvt.s32.f32 %v482
        %v485 = vcvt.s32.f32 %v483
        %486 = vmin.xlane.f32.xlu0 %v485
        %v487 = vpop.xlane.xlu0 %486
        %vm488 = vcmp.eq.f32.partialorder %v485, %v487
        %v489 = vsel %vm488, %v484, inf
        %490 = vmin.xlane.f32.xlu0 %v489
        %v491 = vpop.xlane.xlu0 %490
        %v492 = vcvt.f32.s32 %v491
        %v493 = vcvt.f32.s32 %v487
        %v494 = vshll.u32 %v493, 16
        %v495 = vadd.s32 %v494, %v492
        %v496 = vpack.c.bf16 %v479, %v479
        %vm497 = vcmask 35872
        %498 = vst.msk [vmem:[%s180] sm:$0xf] %vm497, %v496
        %vm499 = vcmask 39968
        %500 = vst.msk [vmem:[%s187] sm:$0xff] %vm499, %v495
        %vm501 = vcmp.eq.s32.totalorder %v197, %v495
        %v502 = vsel %vm501, -inf, %v477
        %503 = vmax.xlane.f32.xlu0 %v502
        %v504 = vpop.xlane.xlu0 %503
        %vm505 = vcmp.eq.f32.partialorder %v502, %v504
        %v506 = vsel %vm505, %v197, 128
        %v507 = vand.u32 %v506, 65535
        %v508 = vshra.s32 %v506, 16
        %v509 = vcvt.s32.f32 %v507
        %v510 = vcvt.s32.f32 %v508
        %511 = vmin.xlane.f32.xlu0 %v510
        %v512 = vpop.xlane.xlu0 %511
        %vm513 = vcmp.eq.f32.partialorder %v510, %v512
        %v514 = vsel %vm513, %v509, inf
        %515 = vmin.xlane.f32.xlu0 %v514
        %v516 = vpop.xlane.xlu0 %515
        %v517 = vcvt.f32.s32 %v516
        %v518 = vcvt.f32.s32 %v512
        %v519 = vshll.u32 %v518, 16
        %v520 = vadd.s32 %v519, %v517
        %v521 = vpack.c.bf16 %v504, %v504
        %vm522 = vcmask 44072
        %523 = vst.msk [vmem:[%s180] sm:$0xf] %vm522, %v521
        %vm524 = vcmask 48168
        %525 = vst.msk [vmem:[%s187] sm:$0xff] %vm524, %v520
        %vm526 = vcmp.eq.s32.totalorder %v197, %v520
        %v527 = vsel %vm526, -inf, %v502
        %528 = vmax.xlane.f32.xlu0 %v527
        %v529 = vpop.xlane.xlu0 %528
        %vm530 = vcmp.eq.f32.partialorder %v527, %v529
        %v531 = vsel %vm530, %v197, 128
        %v532 = vand.u32 %v531, 65535
        %v533 = vshra.s32 %v531, 16
        %v534 = vcvt.s32.f32 %v532
        %v535 = vcvt.s32.f32 %v533
        %536 = vmin.xlane.f32.xlu0 %v535
        %v537 = vpop.xlane.xlu0 %536
        %vm538 = vcmp.eq.f32.partialorder %v535, %v537
        %v539 = vsel %vm538, %v534, inf
        %540 = vmin.xlane.f32.xlu0 %v539
        %v541 = vpop.xlane.xlu0 %540
        %v542 = vcvt.f32.s32 %v541
        %v543 = vcvt.f32.s32 %v537
        %v544 = vshll.u32 %v543, 16
        %v545 = vadd.s32 %v544, %v542
        %v546 = vpack.c.bf16 %v529, %v529
        %vm547 = vcmask 52272
        %548 = vst.msk [vmem:[%s180] sm:$0xf] %vm547, %v546
        %vm549 = vcmask 56368
        %550 = vst.msk [vmem:[%s187] sm:$0xff] %vm549, %v545
        %vm551 = vcmp.eq.s32.totalorder %v197, %v545
        %v552 = vsel %vm551, -inf, %v527
        %553 = vmax.xlane.f32.xlu0 %v552
        %v554 = vpop.xlane.xlu0 %553
        %vm555 = vcmp.eq.f32.partialorder %v552, %v554
        %v556 = vsel %vm555, %v197, 128
        %v557 = vand.u32 %v556, 65535
        %v558 = vshra.s32 %v556, 16
        %v559 = vcvt.s32.f32 %v557
        %v560 = vcvt.s32.f32 %v558
        %561 = vmin.xlane.f32.xlu0 %v560
        %v562 = vpop.xlane.xlu0 %561
        %vm563 = vcmp.eq.f32.partialorder %v560, %v562
        %v564 = vsel %vm563, %v559, inf
        %565 = vmin.xlane.f32.xlu0 %v564
        %v566 = vpop.xlane.xlu0 %565
        %v567 = vcvt.f32.s32 %v566
        %v568 = vcvt.f32.s32 %v562
        %v569 = vshll.u32 %v568, 16
        %v570 = vadd.s32 %v569, %v567
        %v571 = vpack.c.bf16 %v554, %v554
        %vm572 = vcmask 60472
        %573 = vst.msk [vmem:[%s180] sm:$0xf] %vm572, %v571
        %vm574 = vcmask 64568
        %575 = vst.msk [vmem:[%s187] sm:$0xff] %vm574, %v570
        %s576 = sand.u32 %s77, 1
        %s577 = scalar_lea.sflag [#allocation4], %s576
        %s578 = sand.u32 %s77, 1
        %s579 = smul.addr %s578, 4
        %s580 = scalar_lea.vmem [#allocation5], %s579
        %s581 = sand.u32 %s103, 1
        %s582 = scalar_lea.sflag [#allocation7], %s581
        %s583 = sand.u32 %s103, 1
        %s584 = smul.addr %s583, 8
        %s585 = scalar_lea.vmem [#allocation6], %s584
        // Predicated region
        $region33: #{tpu_custom_call.1} parent=27 // pred_check
          %p586 = pneg %p87
        $region34: #{tpu_custom_call.1} parent=27 // pred_check_branch
          %588 = sbr.rel (%p586) target = $region36
        $region35: #{tpu_custom_call.1} parent=27 // pred_region
          %s590 = ssub.s32 64, 64
          %591 = vsyncadd %s577, %s590
          %s592 = smul.addr %s22, 64
          %s593 = scalar_lea.hbm %s2, %s592
          %s595 = sshll.u32 %s580, 4
          %s596 = int_to_ptr.vmem [resolvable:$true] %s595
          %598 = dma.vmem_to_hbm [thread:$0]  %s596, 64, %s593, %s577
        $region36: #{tpu_custom_call.1} parent=27 // pred_fallthru
          _
        // Predicated region
        $region37: #{tpu_custom_call.1} parent=27 // pred_check
          %p599 = pneg %p113
        $region38: #{tpu_custom_call.1} parent=27 // pred_check_branch
          %601 = sbr.rel (%p599) target = $region40
        $region39: #{tpu_custom_call.1} parent=27 // pred_region
          %s603 = ssub.s32 128, 128
          %604 = vsyncadd %s582, %s603
          %s605 = smul.addr %s22, 128
          %s606 = scalar_lea.hbm %s3, %s605
          %s608 = sshll.u32 %s585, 4
          %s609 = int_to_ptr.vmem [resolvable:$true] %s608
          %611 = dma.vmem_to_hbm [thread:$0]  %s609, 128, %s606, %s582
        $region40: #{tpu_custom_call.1} parent=27 // pred_fallthru
          _
      $region28: #{tpu_custom_call.1} parent=5 // pred_fallthru
        _
      %p612 = scmp.le.s32.totalorder 2, %s17
      // Predicated region
      $region41: #{tpu_custom_call.1} parent=5 // pred_check
        %p613 = pneg %p612
      $region42: #{tpu_custom_call.1} parent=5 // pred_check_branch
        %615 = sbr.rel (%p613) target = $region44
      $region43: #{tpu_custom_call.1} parent=5 // pred_region
        %s616 = ssub.s32 %s17, 2
        // Predicated region
        $region45: #{tpu_custom_call.1} parent=43 // pred_check
          %p617 = pneg %p93
        $region46: #{tpu_custom_call.1} parent=43 // pred_check_branch
          %619 = sbr.rel (%p617) target = $region48
        $region47: #{tpu_custom_call.1} parent=43 // pred_region
          %s620 = sand.u32 %s78, 1
          %s621 = scalar_lea.sflag [#allocation4], %s620
          %s622 = sand.u32 %s78, 1
          %s623 = smul.addr %s622, 4
          %s624 = scalar_lea.vmem [#allocation5], %s623
          %625 = dma.done %s621, 64
        $region48: #{tpu_custom_call.1} parent=43 // pred_fallthru
          _
        // Predicated region
        $region49: #{tpu_custom_call.1} parent=43 // pred_check
          %p626 = pneg %p119
        $region50: #{tpu_custom_call.1} parent=43 // pred_check_branch
          %628 = sbr.rel (%p626) target = $region52
        $region51: #{tpu_custom_call.1} parent=43 // pred_region
          %s629 = sand.u32 %s104, 1
          %s630 = scalar_lea.sflag [#allocation7], %s629
          %s631 = sand.u32 %s104, 1
          %s632 = smul.addr %s631, 8
          %s633 = scalar_lea.vmem [#allocation6], %s632
          %634 = dma.done %s630, 128
        $region52: #{tpu_custom_call.1} parent=43 // pred_fallthru
          _
      $region44: #{tpu_custom_call.1} parent=5 // pred_fallthru
        _
    $region6: #{tpu_custom_call.1} parent=1 // loop_footer
      %s21 = sadd.s32 1, %s17
    $region7: #{tpu_custom_call.1} parent=1 // loop_footer_branch
      %16 = sbr.rel target = $region3
    $region8: #{tpu_custom_call.1} parent=1 // loop_exit
      _
    %635 = vsyncpa [#allocation3], 1
    %s636 = scalar_lea.sflag [#allocation3], 1
    %637 = vsyncpa %s636, 1
    %638 = vsyncpa [#allocation4], 1
    %s639 = scalar_lea.sflag [#allocation4], 1
    %640 = vsyncpa %s639, 1
    %641 = vsyncpa [#allocation7], 1
    %s642 = scalar_lea.sflag [#allocation7], 1
    %643 = vsyncpa %s642, 1

</llo_original>
